<compile_context>
chip_gen: v6e
topology: v6e:2x2x1
jax: 0.10.0
libtpu: 0.0.40
codegen_flags: <defaults>
</compile_context>

<pallas_src>
import functools

import jax
import jax.numpy as jnp
from jax.experimental import pallas as pl
from jax.experimental.pallas import tpu as pltpu


def _rmsnorm_kernel(x_ref, w1p_ref, o_ref, *, eps: float, inv_dim: float):
    # x_ref: (block_rows, hidden) tile; w1p_ref: (1, hidden) resident
    # precomputed (1 + weight) in float32.
    xf = x_ref[...].astype(jnp.float32)
    # mean-of-squares over the lane axis as sum * compile-time reciprocal.
    ms = jnp.sum(xf * xf, axis=-1, keepdims=True) * inv_dim
    inv = jax.lax.rsqrt(ms + eps)
    # Second ref read + upcast: avoids keeping the first full-tile f32 copy
    # live across the XLU reduction (lower VMEM/vreg pressure).
    o_ref[...] = ((x_ref[...].astype(jnp.float32) * inv) * w1p_ref[...]).astype(
        o_ref.dtype)


def _round_up(x: int, m: int) -> int:
    return ((x + m - 1) // m) * m


def _vmem_capacity_bytes() -> int:
    """Per-core VMEM capacity; conservative 64 MiB fallback (v7x-sized)."""
    try:
        return int(pltpu.get_tpu_info().vmem_capacity_bytes)
    except Exception:
        return 64 * 1024 * 1024


def _pick_block_rows(rows: int, dim: int, itemsize: int,
                     tile_budget_bytes: int) -> int:
    """Row-tile size: as large as the VMEM budget allows (accounting for the
    in-kernel f32 temps), packed-sublane aligned, >= 2 grid steps when the
    problem allows it, and an even step count for 2-TC balance."""
    # sublane packing multiple: 8 rows (f32), 16 (bf16), 32 (int8/fp8)
    row_multiple = max(8, 32 // max(itemsize, 1))
    # Per row of tile:
    #   double-buffered input  tile: 2 * dim * itemsize
    #   double-buffered output tile: 2 * dim * itemsize
    #   in-kernel f32 temps (upcast + product), be safe: 2 * dim * 4
    bytes_per_row = 4 * dim * itemsize + 8 * dim
    fit = max(tile_budget_bytes // max(bytes_per_row, 1), row_multiple)
    block_rows = max(row_multiple, (int(fit) // row_multiple) * row_multiple)
    # never bigger than the (sublane-rounded) problem
    block_rows = min(block_rows, _round_up(rows, row_multiple))

    # Ensure >= 2 steps when possible (lets the grid shard across v7x's 2 TCs).
    if rows > row_multiple and pl.cdiv(rows, block_rows) < 2:
        block_rows = max(row_multiple,
                         _round_up(pl.cdiv(rows, 2), row_multiple))

    # Best-effort: avoid a small odd step count (e.g. 3 -> one TC gets 2 tiles,
    # the other 1).  No-op on single-TC chips and for large step counts.
    steps = pl.cdiv(rows, block_rows)
    if 1 < steps < 8 and steps % 2 == 1:
        cand = max(row_multiple,
                   _round_up(pl.cdiv(rows, steps + 1), row_multiple))
        if cand >= row_multiple and pl.cdiv(rows, cand) % 2 == 0:
            block_rows = cand
    return block_rows


def gemma_rms_norm(x: jax.Array, weight: jax.Array, eps: float = 1e-6,
                   block_rows: int | None = None) -> jax.Array:
    """Pallas implementation of GemmaRMSNorm.forward.

    x: any shape (..., dim); weight: (dim,). Returns same shape/dtype as x.
    `dim` should ideally be a multiple of 128 for lane-dense stores (true for
    real Gemma hidden sizes); other dims still work correctly.
    """
    orig_shape = x.shape
    dim = orig_shape[-1]
    assert weight.shape == (dim,)

    rows = 1
    for s in orig_shape[:-1]:
        rows *= s
    x2 = x.reshape(rows, dim)
    # Precompute (1 + weight) once, in float32, as the resident operand.
    w1p = (1.0 + weight.astype(jnp.float32)).reshape(1, dim)

    itemsize = jnp.dtype(x.dtype).itemsize

    # Generation-aware VMEM budgeting.
    vmem_cap = _vmem_capacity_bytes()
    tile_budget = vmem_cap // 4                       # 16 MiB (v7x) / 32 MiB (v5e/v6e)
    vmem_limit = min(vmem_cap - 8 * 1024 * 1024,      # leave headroom
                     96 * 1024 * 1024)

    if block_rows is None:
        block_rows = _pick_block_rows(rows, dim, itemsize, tile_budget)

    # No jnp.pad: the ragged last block is masked by Pallas; the reduction is
    # per-row so stale rows in the last tile can't pollute valid outputs.
    grid = (pl.cdiv(rows, block_rows),)

    out = pl.pallas_call(
        functools.partial(_rmsnorm_kernel, eps=eps, inv_dim=1.0 / dim),
        out_shape=jax.ShapeDtypeStruct((rows, dim), x.dtype),
        grid_spec=pltpu.PrefetchScalarGridSpec(
            num_scalar_prefetch=0,
            grid=grid,
            in_specs=[
                pl.BlockSpec((block_rows, dim), lambda i: (i, 0)),
                pl.BlockSpec((1, dim), lambda i: (0, 0)),   # resident (1+w)
            ],
            out_specs=pl.BlockSpec((block_rows, dim), lambda i: (i, 0)),
        ),
        compiler_params=pltpu.CompilerParams(
            dimension_semantics=("parallel",),
            vmem_limit_bytes=int(vmem_limit),
        ),
    )(x2, w1p)

    return out.reshape(orig_shape)


def gemma_rms_norm_ref(x, weight, eps=1e-6):
    """Pure-JAX reference matching the PyTorch module."""
    xf = x.astype(jnp.float32)
    out = xf * jax.lax.rsqrt(jnp.mean(xf * xf, axis=-1, keepdims=True) + eps)
    out = out * (1.0 + weight.astype(jnp.float32))
    return out.astype(x.dtype)


if __name__ == "__main__":
    key = jax.random.PRNGKey(0)
    k_x, k_w = jax.random.split(key)

    batch, seq, hidden = 2, 8, 32
    # Module init is torch.zeros(dim); use a small deterministic non-zero
    # weight too so the (1 + weight) path is exercised.
    x = jax.random.normal(k_x, (batch, seq, hidden), dtype=jnp.bfloat16)
    weight = 0.1 * jax.random.normal(k_w, (hidden,), dtype=jnp.float32)

    out = gemma_rms_norm(x, weight, eps=1e-6)
    out = jax.block_until_ready(out)

    ref = gemma_rms_norm_ref(x, weight, eps=1e-6)
    assert out.shape == x.shape and out.dtype == x.dtype
    assert jnp.allclose(out.astype(jnp.float32), ref.astype(jnp.float32),
                        atol=1e-2, rtol=1e-2)

    # Also exercise a ragged, larger-row case (multi-step grid, even steps).
    x2 = jax.random.normal(k_x, (3, 37, 256), dtype=jnp.bfloat16)
    w2 = 0.05 * jax.random.normal(k_w, (256,), dtype=jnp.float32)
    out2 = jax.block_until_ready(gemma_rms_norm(x2, w2, eps=1e-6))
    ref2 = gemma_rms_norm_ref(x2, w2, eps=1e-6)
    assert out2.shape == x2.shape and out2.dtype == x2.dtype
    assert jnp.allclose(out2.astype(jnp.float32), ref2.astype(jnp.float32),
                        atol=1e-2, rtol=1e-2)

    # float32 input path as well.
    x3 = jax.random.normal(k_x, (4, 24, 128), dtype=jnp.float32)
    w3 = 0.05 * jax.random.normal(k_w, (128,), dtype=jnp.float32)
    out3 = jax.block_until_ready(gemma_rms_norm(x3, w3, eps=1e-6))
    ref3 = gemma_rms_norm_ref(x3, w3, eps=1e-6)
    assert jnp.allclose(out3, ref3, atol=1e-5, rtol=1e-5)

    print("KERNEL_OK")
</pallas_src>

<mosaic_0001>
module attributes {stable_mosaic.version = 11 : i64} {
  func.func @_rmsnorm_kernel(%arg0: i32, %arg1: memref<16x32xbf16, #tpu.memory_space<vmem>>, %arg2: memref<1x32xf32, #tpu.memory_space<vmem>>, %arg3: memref<16x32xbf16, #tpu.memory_space<vmem>>) attributes {dimension_semantics = [#tpu.dimension_semantics<parallel>], iteration_bounds = array<i64: 1>, scalar_prefetch = 0 : i64, scratch_operands = 0 : i64, tpu.core_type = #tpu.core_type<tc>, window_params = [{transform_indices = @transform_0, window_bounds = array<i64: 16, 32>}, {pipeline_mode = #tpu.pipeline_mode<synchronous>, transform_indices = @transform_1, window_bounds = array<i64: 1, 32>}, {transform_indices = @transform_2, window_bounds = array<i64: 16, 32>}]} {
    %c0 = arith.constant 0 : index
    %c0_0 = arith.constant 0 : index
    %0 = vector.load %arg1[%c0, %c0_0] : memref<16x32xbf16, #tpu.memory_space<vmem>>, vector<16x32xbf16>
    %1 = arith.extf %0 : vector<16x32xbf16> to vector<16x32xf32>
    %2 = arith.mulf %1, %1 : vector<16x32xf32>
    %cst = arith.constant dense<0.000000e+00> : vector<16xf32>
    %3 = vector.multi_reduction <add>, %2, %cst [1] : vector<16x32xf32> to vector<16xf32>
    %4 = vector.shape_cast %3 : vector<16xf32> to vector<16x1xf32>
    %cst_1 = arith.constant 3.125000e-02 : f32
    %5 = vector.broadcast %cst_1 : f32 to vector<16x1xf32>
    %6 = arith.mulf %4, %5 : vector<16x1xf32>
    %cst_2 = arith.constant 9.99999997E-7 : f32
    %7 = vector.broadcast %cst_2 : f32 to vector<16x1xf32>
    %8 = arith.addf %6, %7 : vector<16x1xf32>
    %9 = math.rsqrt %8 : vector<16x1xf32>
    %c0_3 = arith.constant 0 : index
    %c0_4 = arith.constant 0 : index
    %10 = vector.load %arg1[%c0_3, %c0_4] : memref<16x32xbf16, #tpu.memory_space<vmem>>, vector<16x32xbf16>
    %11 = arith.extf %10 : vector<16x32xbf16> to vector<16x32xf32>
    %12 = vector.broadcast %9 : vector<16x1xf32> to vector<16x32xf32>
    %13 = arith.mulf %11, %12 : vector<16x32xf32>
    %c0_5 = arith.constant 0 : index
    %c0_6 = arith.constant 0 : index
    %14 = vector.load %arg2[%c0_5, %c0_6] : memref<1x32xf32, #tpu.memory_space<vmem>>, vector<1x32xf32>
    %15 = vector.broadcast %14 : vector<1x32xf32> to vector<16x32xf32>
    %16 = arith.mulf %13, %15 : vector<16x32xf32>
    %17 = arith.truncf %16 : vector<16x32xf32> to vector<16x32xbf16>
    %c0_7 = arith.constant 0 : index
    %c0_8 = arith.constant 0 : index
    %18 = vector.load %arg3[%c0_7, %c0_8] : memref<16x32xbf16, #tpu.memory_space<vmem>>, vector<16x32xbf16>
    tpu.vector_store %arg3[%c0_7, %c0_8], %17 {strides = array<i32>} : memref<16x32xbf16, #tpu.memory_space<vmem>>, vector<16x32xbf16>,
    return
  }
  func.func @transform_0(%arg0: i32) -> (i32, i32) {
    %c0_i32 = arith.constant 0 : i32
    %c0_i32_0 = arith.constant 0 : i32
    return %arg0, %c0_i32 : i32, i32
  }
  func.func @transform_1(%arg0: i32) -> (i32, i32) {
    %c0_i32 = arith.constant 0 : i32
    %c0_i32_0 = arith.constant 0 : i32
    %c0_i32_1 = arith.constant 0 : i32
    return %c0_i32, %c0_i32_0 : i32, i32
  }
  func.func @transform_2(%arg0: i32) -> (i32, i32) {
    %c0_i32 = arith.constant 0 : i32
    %c0_i32_0 = arith.constant 0 : i32
    return %arg0, %c0_i32 : i32, i32
  }
}

</mosaic_0001>

<llo_original>
// kernel: tpu_custom_call.1
$region0: #{tpu_custom_call.1}
  #allocation0 [shape = 'u32[]', space=smem, size = 0x4, offset = 0x4, fixed_abs, tag = 'smem constant byte address 0x4 - core index']
  #allocation1 [shape = 'u32[144,128]{1,0:T(1,128)}', space=vmem, size = 0x12000, scoped, tag = 'internal scratch']
  %s0 = inlined_call_operand.hbm [shape: bf16[16,32], index: 0, kind: input, shape index: {}]
  %s1 = inlined_call_operand.vmem [shape: f32[1,32], index: 1, kind: input, shape index: {}]
  %s2 = inlined_call_operand.hbm [shape: bf16[16,32], index: 2, kind: output, shape index: {}]
  %s3 = sld [smem:[#allocation0]]
  $region22: #{tpu_custom_call.1} parent=0
    _
  %s5 = ssub.s32 1, %s3
  %s6 = scalar_select 0, %s5, %s3
  $region1: #{tpu_custom_call.1} parent=0
    #allocation2 [shape = 'u8[4096]{0}', space=vmem, size = 0x1000, scoped, tag = 'input window, operand 0, single buffered']
    #allocation3 [shape = 's32[1]{0}', space=sflag, size = 0x4, scoped, tag = 'scoped memory for tpu_custom_call.1']
    #allocation4 [shape = 's32[1]{0}', space=sflag, size = 0x4, scoped, tag = 'scoped memory for tpu_custom_call.1']
    #allocation5 [shape = 'u8[4096]{0}', space=vmem, size = 0x1000, scoped, tag = 'output window, operand 0, single buffered']
    %7 = vsyncpa [#allocation3], 0
    %8 = vsyncpa [#allocation4], 0
    // Predicated region
    $region2: #{tpu_custom_call.1} parent=1 // pred_check
      _
    $region3: #{tpu_custom_call.1} parent=1 // pred_check_branch
      %10 = sbr.rel (0) target = $region5
    $region4: #{tpu_custom_call.1} parent=1 // pred_region
      %s12 = ssub.s32 128, 128
      %13 = vsyncadd [#allocation3], %s12
      %s14 = sshll.u32 [#allocation2], 4
      %s15 = int_to_ptr.vmem [resolvable:$true] %s14
      %20 = dma.hbm_to_vmem [thread:$0]  %s0, 128, %s15, [#allocation3], 64, 64, 4
    $region5: #{tpu_custom_call.1} parent=1 // pred_fallthru
      _
    // Predicated region
    $region6: #{tpu_custom_call.1} parent=1 // pred_check
      _
    $region7: #{tpu_custom_call.1} parent=1 // pred_check_branch
      %22 = sbr.rel (0) target = $region9
    $region8: #{tpu_custom_call.1} parent=1 // pred_region
      _
    $region9: #{tpu_custom_call.1} parent=1 // pred_fallthru
      _
    // Predicated region
    $region10: #{tpu_custom_call.1} parent=1 // pred_check
      _
    $region11: #{tpu_custom_call.1} parent=1 // pred_check_branch
      %24 = sbr.rel (0) target = $region13
    $region12: #{tpu_custom_call.1} parent=1 // pred_region
      %25 = dma.done [#allocation3], 128
    $region13: #{tpu_custom_call.1} parent=1 // pred_fallthru
      _
    %v26 = vld [vmem:[#allocation2] sm:$0xf]
    %v27 = vld [vmem:[#allocation2 + $0x4] sm:$0xf]
    %v28 = vunpack.c.l.bf16 %v26
    %v29 = vunpack.c.l.bf16 %v27
    %v30 = vmul.f32 %v28, %v28
    %v31 = vmul.f32 %v29, %v29
    %vm32 = vcmask 261120
    %v33 = vsel %vm32, %v30, 0.0
    %34 = vadd.xlane.f32.xlu0 %v33
    %v35 = vpop.xlane.xlu0 %34
    %v36 = vsel %vm32, %v31, 0.0
    %37 = vadd.xlane.f32.xlu0 %v36
    %v38 = vpop.xlane.xlu0 %37
    %v39 = vmul.f32 %v35, 0.03125
    %v40 = vmul.f32 %v38, 0.03125
    %v41 = vadd.f32 %v39, 1e-06
    %v42 = vadd.f32 %v40, 1e-06
    %v43 = vrsqrt.pop %v41
    %v44 = vrsqrt.pop %v42
    %v45 = vmul.f32 %v28, %v43
    %v46 = vmul.f32 %v29, %v44
    %v47 = vld [vmem:[%s1] sm:$0x1]
    %v49 = vlaneseq
    %v50 = vshrl.u32 %v49, 7
    %v51 = vsub.s32 0, %v50
    %v52 = vrot.slane %v47, %v51
    %v54 = vmul.f32 %v45, %v52
    %v55 = vmul.f32 %v46, %v52
    %v56 = vpack.c.bf16 %v55, %v54
    %v58 = vunpack.c.l.b16 %v56
    %v59 = vunpack.c.h.b16 %v56
    %v60 = vpack.c.b16 %v58, %v58
    %v61 = vpack.c.b16 %v59, %v59
    %vm64 = vcmask 257024
    %65 = vst.msk [vmem:[#allocation5] sm:$0xf] %vm64, %v60
    %66 = vst.msk [vmem:[#allocation5 + $0x4] sm:$0xf] %vm64, %v61
    // Predicated region
    $region14: #{tpu_custom_call.1} parent=1 // pred_check
      _
    $region15: #{tpu_custom_call.1} parent=1 // pred_check_branch
      %68 = sbr.rel (0) target = $region17
    $region16: #{tpu_custom_call.1} parent=1 // pred_region
      %s70 = ssub.s32 128, 128
      %71 = vsyncadd [#allocation4], %s70
      %s72 = sshll.u32 [#allocation5], 4
      %s73 = int_to_ptr.vmem [resolvable:$true] %s72
      %78 = dma.vmem_to_hbm [thread:$0]  %s73, 128, %s2, [#allocation4], 64, 64, 4
    $region17: #{tpu_custom_call.1} parent=1 // pred_fallthru
      _
    // Predicated region
    $region18: #{tpu_custom_call.1} parent=1 // pred_check
      _
    $region19: #{tpu_custom_call.1} parent=1 // pred_check_branch
      %80 = sbr.rel (0) target = $region21
    $region20: #{tpu_custom_call.1} parent=1 // pred_region
      %81 = dma.done [#allocation4], 128
    $region21: #{tpu_custom_call.1} parent=1 // pred_fallthru
      _
    %82 = vsyncpa [#allocation3], 1
    %83 = vsyncpa [#allocation4], 1

</llo_original>
